<compile_context>
chip_gen: v5e
topology: v5e:2x2
jax: 0.10.0
libtpu: 0.0.40
codegen_flags: <defaults>
</compile_context>

<pallas_src>
import functools

import jax
import jax.numpy as jnp
from jax import lax
from jax.experimental import pallas as pl
from jax.experimental.pallas import tpu as pltpu

LN_EPS = 1e-5


def _round_up(x, m):
    return (x + m - 1) // m * m


def _residual_kernel(x_ref, w_ref, b_ref, g_ref, beta_ref, o_ref, *, d_real):
    # x_ref:    (tm, Dp)  input rows (caller dtype; f32 or bf16)
    # w_ref:    (Dp, Dp)  sublayer weight in PyTorch (out, in) layout, stored
    #                     dtype (bf16 preferred); resident across the grid
    # b_ref:    (1, Dp)   sublayer bias (f32)
    # g_ref:    (1, Dp)   LayerNorm gamma (f32, zero in padded lanes)
    # beta_ref: (1, Dp)   LayerNorm beta  (f32, zero in padded lanes)
    # o_ref:    (tm, Dp)  output rows
    x = x_ref[...]

    # sublayer(x) = x @ W^T + b : contract x dim 1 with W dim 1 directly (no
    # transpose), MXU-native operand dtype with f32 accumulation.
    sub = lax.dot_general(
        x.astype(w_ref.dtype), w_ref[...],
        dimension_numbers=(((1,), (1,)), ((), ())),
        preferred_element_type=jnp.float32,
    ) + b_ref[...].astype(jnp.float32)

    # TODO(synk): dropout implemented as identity (eval mode); training-mode
    # stochastic dropout would use pltpu.prng_seed / pltpu.prng_random_bits.
    r = x.astype(jnp.float32) + sub

    # Fused single-pass LayerNorm statistics over the *real* hidden width.
    # Padded lanes of r are exactly zero, so the padded-width sums equal the
    # real-width sums; divide by d_real.
    inv_d = jnp.float32(1.0 / d_real)
    s1 = jnp.sum(r, axis=-1, keepdims=True)
    s2 = jnp.sum(r * r, axis=-1, keepdims=True)
    mean = s1 * inv_d
    var = jnp.maximum(s2 * inv_d - mean * mean, 0.0)
    norm = (r - mean) * lax.rsqrt(var + LN_EPS)
    y = norm * g_ref[...].astype(jnp.float32) + beta_ref[...].astype(jnp.float32)

    o_ref[...] = y.astype(o_ref.dtype)


def residual_forward(x, w, b, gamma, beta, *, tm=256):
    """Residual + Linear + LayerNorm forward.

    x:     [B, S, D]  activations (f32 or bf16)
    w:     [D, D]     PyTorch Linear weight, (out, in) layout; bf16 preferred
    b:     [D]        Linear bias
    gamma: [D]        LayerNorm weight
    beta:  [D]        LayerNorm bias
    """
    B, S, D = x.shape
    M = B * S

    # Lane-dense hidden dim and row tile (no divisibility requirement on M).
    D_pad = _round_up(D, 128)
    tm_eff = min(tm, _round_up(M, 8))
    M_pad = _round_up(M, tm_eff)

    x2 = x.reshape(M, D)
    if M_pad != M or D_pad != D:
        x2 = jnp.pad(x2, ((0, M_pad - M), (0, D_pad - D)))
    if D_pad != D:
        w_p = jnp.pad(w, ((0, D_pad - D), (0, D_pad - D)))
        b_p = jnp.pad(b, (0, D_pad - D))
        g_p = jnp.pad(gamma, (0, D_pad - D))
        be_p = jnp.pad(beta, (0, D_pad - D))
    else:
        w_p, b_p, g_p, be_p = w, b, gamma, beta

    b2 = b_p.astype(jnp.float32).reshape(1, D_pad)
    g2 = g_p.astype(jnp.float32).reshape(1, D_pad)
    be2 = be_p.astype(jnp.float32).reshape(1, D_pad)

    # Explicit VMEM budget: resident weight + double-buffered in/out tiles
    # + f32 temporaries, clamped to the smallest per-TC physical VMEM (v7x).
    w_bytes = D_pad * D_pad * jnp.dtype(w_p.dtype).itemsize
    io_bytes = 2 * tm_eff * D_pad * (
        jnp.dtype(x2.dtype).itemsize + jnp.dtype(x.dtype).itemsize)
    tmp_bytes = 6 * tm_eff * D_pad * 4
    vmem_limit = int(min(max(w_bytes + io_bytes + tmp_bytes + (2 << 20),
                             32 << 20), 64 << 20))

    kernel = functools.partial(_residual_kernel, d_real=D)

    out = pl.pallas_call(
        kernel,
        out_shape=jax.ShapeDtypeStruct((M_pad, D_pad), x.dtype),
        grid_spec=pltpu.PrefetchScalarGridSpec(
            num_scalar_prefetch=0,
            grid=(M_pad // tm_eff,),
            in_specs=[
                pl.BlockSpec((tm_eff, D_pad), lambda i: (i, 0)),  # x rows
                pl.BlockSpec((D_pad, D_pad), lambda i: (0, 0)),   # W (resident)
                pl.BlockSpec((1, D_pad), lambda i: (0, 0)),       # bias
                pl.BlockSpec((1, D_pad), lambda i: (0, 0)),       # gamma
                pl.BlockSpec((1, D_pad), lambda i: (0, 0)),       # beta
            ],
            out_specs=pl.BlockSpec((tm_eff, D_pad), lambda i: (i, 0)),
        ),
        compiler_params=pltpu.CompilerParams(
            dimension_semantics=("parallel",),
            vmem_limit_bytes=vmem_limit,
        ),
    )(x2, w_p, b2, g2, be2)

    return out[:M, :D].reshape(B, S, D)


def residual_reference(x, w, b, gamma, beta):
    """Pure-JAX reference of the PyTorch forward (dropout in eval mode), using
    the same mixed-precision policy as the kernel: matmul operands in the
    weight's dtype with f32 accumulation, residual + LayerNorm in f32."""
    sub = lax.dot_general(
        x.astype(w.dtype), w,
        dimension_numbers=(((2,), (1,)), ((), ())),
        preferred_element_type=jnp.float32,
    ) + b.astype(jnp.float32)
    r = x.astype(jnp.float32) + sub
    mean = jnp.mean(r, axis=-1, keepdims=True)
    var = jnp.mean((r - mean) ** 2, axis=-1, keepdims=True)
    y = (r - mean) / jnp.sqrt(var + LN_EPS) * gamma.astype(jnp.float32) \
        + beta.astype(jnp.float32)
    return y.astype(x.dtype)


if __name__ == "__main__":
    B, S, D = 2, 8, 32
    key = jax.random.PRNGKey(0)
    kx, kw, kb = jax.random.split(key, 3)

    x = jax.random.normal(kx, (B, S, D), dtype=jnp.float32)
    # Deterministic "Linear(D, D)" parameter init (synthetic, not a checkpoint).
    # Weight stored in bf16: the MXU-native fast path (f32 accumulation in-kernel).
    w = (jax.random.normal(kw, (D, D), dtype=jnp.float32)
         * (1.0 / jnp.sqrt(D))).astype(jnp.bfloat16)
    b = jax.random.normal(kb, (D,), dtype=jnp.float32) * 0.01
    # LayerNorm default init: gamma = 1, beta = 0.
    gamma = jnp.ones((D,), dtype=jnp.float32)
    beta = jnp.zeros((D,), dtype=jnp.float32)

    out = residual_forward(x, w, b, gamma, beta)
    out = jax.block_until_ready(out)

    ref = residual_reference(x, w, b, gamma, beta)
    assert out.shape == (B, S, D)
    assert jnp.allclose(out, ref, atol=1e-3, rtol=1e-3), "mismatch vs reference"

    print("KERNEL_OK")
</pallas_src>

<mosaic_0001>
module attributes {stable_mosaic.version = 11 : i64} {
  func.func @_residual_kernel(%arg0: i32, %arg1: memref<16x128xf32, #tpu.memory_space<vmem>>, %arg2: memref<128x128xbf16, #tpu.memory_space<vmem>>, %arg3: memref<1x128xf32, #tpu.memory_space<vmem>>, %arg4: memref<1x128xf32, #tpu.memory_space<vmem>>, %arg5: memref<1x128xf32, #tpu.memory_space<vmem>>, %arg6: memref<16x128xf32, #tpu.memory_space<vmem>>) attributes {dimension_semantics = [#tpu.dimension_semantics<parallel>], iteration_bounds = array<i64: 1>, scalar_prefetch = 0 : i64, scratch_operands = 0 : i64, tpu.core_type = #tpu.core_type<tc>, window_params = [{transform_indices = @transform_0, window_bounds = array<i64: 16, 128>}, {pipeline_mode = #tpu.pipeline_mode<synchronous>, transform_indices = @transform_1, window_bounds = array<i64: 128, 128>}, {pipeline_mode = #tpu.pipeline_mode<synchronous>, transform_indices = @transform_2, window_bounds = array<i64: 1, 128>}, {pipeline_mode = #tpu.pipeline_mode<synchronous>, transform_indices = @transform_3, window_bounds = array<i64: 1, 128>}, {pipeline_mode = #tpu.pipeline_mode<synchronous>, transform_indices = @transform_4, window_bounds = array<i64: 1, 128>}, {transform_indices = @transform_5, window_bounds = array<i64: 16, 128>}]} {
    %c0 = arith.constant 0 : index
    %c0_0 = arith.constant 0 : index
    %0 = vector.load %arg1[%c0, %c0_0] : memref<16x128xf32, #tpu.memory_space<vmem>>, vector<16x128xf32>
    %1 = arith.truncf %0 : vector<16x128xf32> to vector<16x128xbf16>
    %c0_1 = arith.constant 0 : index
    %c0_2 = arith.constant 0 : index
    %2 = vector.load %arg2[%c0_1, %c0_2] : memref<128x128xbf16, #tpu.memory_space<vmem>>, vector<128x128xbf16>
    %cst = arith.constant dense<0.000000e+00> : vector<16x128xf32>
    %3 = tpu.matmul %1, %2, %cst {dimension_numbers = #tpu.dot_dimension_numbers<[1], [1], [0], [0], [0, 0, 1, 0], [], []>} : vector<16x128xbf16>, vector<128x128xbf16>, vector<16x128xf32> -> vector<16x128xf32>
    %c0_3 = arith.constant 0 : index
    %c0_4 = arith.constant 0 : index
    %4 = vector.load %arg3[%c0_3, %c0_4] : memref<1x128xf32, #tpu.memory_space<vmem>>, vector<1x128xf32>
    %5 = vector.broadcast %4 : vector<1x128xf32> to vector<16x128xf32>
    %6 = arith.addf %3, %5 : vector<16x128xf32>
    %7 = arith.addf %0, %6 : vector<16x128xf32>
    %cst_5 = arith.constant dense<0.000000e+00> : vector<16xf32>
    %8 = vector.multi_reduction <add>, %7, %cst_5 [1] : vector<16x128xf32> to vector<16xf32>
    %9 = vector.shape_cast %8 : vector<16xf32> to vector<16x1xf32>
    %10 = arith.mulf %7, %7 : vector<16x128xf32>
    %cst_6 = arith.constant dense<0.000000e+00> : vector<16xf32>
    %11 = vector.multi_reduction <add>, %10, %cst_6 [1] : vector<16x128xf32> to vector<16xf32>
    %12 = vector.shape_cast %11 : vector<16xf32> to vector<16x1xf32>
    %cst_7 = arith.constant 3.125000e-02 : f32
    %13 = vector.broadcast %cst_7 : f32 to vector<16x1xf32>
    %14 = arith.mulf %9, %13 : vector<16x1xf32>
    %cst_8 = arith.constant 3.125000e-02 : f32
    %15 = vector.broadcast %cst_8 : f32 to vector<16x1xf32>
    %16 = arith.mulf %12, %15 : vector<16x1xf32>
    %17 = arith.mulf %14, %14 : vector<16x1xf32>
    %18 = arith.subf %16, %17 : vector<16x1xf32>
    %cst_9 = arith.constant 0.000000e+00 : f32
    %19 = vector.broadcast %cst_9 : f32 to vector<16x1xf32>
    %20 = arith.maximumf %18, %19 : vector<16x1xf32>
    %21 = vector.broadcast %14 : vector<16x1xf32> to vector<16x128xf32>
    %22 = arith.subf %7, %21 : vector<16x128xf32>
    %cst_10 = arith.constant 9.99999974E-6 : f32
    %23 = vector.broadcast %cst_10 : f32 to vector<16x1xf32>
    %24 = arith.addf %20, %23 : vector<16x1xf32>
    %25 = math.rsqrt %24 : vector<16x1xf32>
    %26 = vector.broadcast %25 : vector<16x1xf32> to vector<16x128xf32>
    %27 = arith.mulf %22, %26 : vector<16x128xf32>
    %c0_11 = arith.constant 0 : index
    %c0_12 = arith.constant 0 : index
    %28 = vector.load %arg4[%c0_11, %c0_12] : memref<1x128xf32, #tpu.memory_space<vmem>>, vector<1x128xf32>
    %29 = vector.broadcast %28 : vector<1x128xf32> to vector<16x128xf32>
    %30 = arith.mulf %27, %29 : vector<16x128xf32>
    %c0_13 = arith.constant 0 : index
    %c0_14 = arith.constant 0 : index
    %31 = vector.load %arg5[%c0_13, %c0_14] : memref<1x128xf32, #tpu.memory_space<vmem>>, vector<1x128xf32>
    %32 = vector.broadcast %31 : vector<1x128xf32> to vector<16x128xf32>
    %33 = arith.addf %30, %32 : vector<16x128xf32>
    %c0_15 = arith.constant 0 : index
    %c0_16 = arith.constant 0 : index
    %34 = vector.load %arg6[%c0_15, %c0_16] : memref<16x128xf32, #tpu.memory_space<vmem>>, vector<16x128xf32>
    tpu.vector_store %arg6[%c0_15, %c0_16], %33 {strides = array<i32>} : memref<16x128xf32, #tpu.memory_space<vmem>>, vector<16x128xf32>,
    return
  }
  func.func @transform_0(%arg0: i32) -> (i32, i32) {
    %c0_i32 = arith.constant 0 : i32
    %c0_i32_0 = arith.constant 0 : i32
    return %arg0, %c0_i32 : i32, i32
  }
  func.func @transform_1(%arg0: i32) -> (i32, i32) {
    %c0_i32 = arith.constant 0 : i32
    %c0_i32_0 = arith.constant 0 : i32
    %c0_i32_1 = arith.constant 0 : i32
    return %c0_i32, %c0_i32_0 : i32, i32
  }
  func.func @transform_2(%arg0: i32) -> (i32, i32) {
    %c0_i32 = arith.constant 0 : i32
    %c0_i32_0 = arith.constant 0 : i32
    %c0_i32_1 = arith.constant 0 : i32
    return %c0_i32, %c0_i32_0 : i32, i32
  }
  func.func @transform_3(%arg0: i32) -> (i32, i32) {
    %c0_i32 = arith.constant 0 : i32
    %c0_i32_0 = arith.constant 0 : i32
    %c0_i32_1 = arith.constant 0 : i32
    return %c0_i32, %c0_i32_0 : i32, i32
  }
  func.func @transform_4(%arg0: i32) -> (i32, i32) {
    %c0_i32 = arith.constant 0 : i32
    %c0_i32_0 = arith.constant 0 : i32
    %c0_i32_1 = arith.constant 0 : i32
    return %c0_i32, %c0_i32_0 : i32, i32
  }
  func.func @transform_5(%arg0: i32) -> (i32, i32) {
    %c0_i32 = arith.constant 0 : i32
    %c0_i32_0 = arith.constant 0 : i32
    return %arg0, %c0_i32 : i32, i32
  }
}

</mosaic_0001>

<llo_original>
// kernel: tpu_custom_call.1
$region0: #{tpu_custom_call.1}
  #allocation0 [shape = 'u32[]', space=smem, size = 0x4, offset = 0x4, fixed_abs, tag = 'smem constant byte address 0x4 - core index']
  #allocation1 [shape = 'u32[72,128]{1,0:T(1,128)}', space=vmem, size = 0x9000, scoped, tag = 'internal scratch']
  %s0 = inlined_call_operand.hbm [shape: f32[16,128], index: 0, kind: input, shape index: {}]
  %s1 = inlined_call_operand.hbm [shape: bf16[128,128], index: 1, kind: input, shape index: {}]
  %s2 = inlined_call_operand.vmem [shape: f32[1,128], index: 2, kind: input, shape index: {}]
  %s3 = inlined_call_operand.vmem [shape: f32[1,128], index: 3, kind: input, shape index: {}]
  %s4 = inlined_call_operand.vmem [shape: f32[1,128], index: 4, kind: input, shape index: {}]
  %s5 = inlined_call_operand.hbm [shape: f32[16,128], index: 5, kind: output, shape index: {}]
  %s6 = sld [smem:[#allocation0]]
  $region38: #{tpu_custom_call.1} parent=0
    _
  %s8 = ssub.s32 1, %s6
  %s9 = scalar_select 0, %s8, %s6
  $region1: #{tpu_custom_call.1} parent=0
    #allocation2 [shape = 'u8[8192]{0}', space=vmem, size = 0x2000, scoped, tag = 'input window, operand 0, single buffered']
    #allocation3 [shape = 's32[1]{0}', space=sflag, size = 0x4, scoped, tag = 'scoped memory for tpu_custom_call.1']
    #allocation4 [shape = 's32[1]{0}', space=sflag, size = 0x4, scoped, tag = 'scoped memory for tpu_custom_call.1']
    #allocation5 [shape = 'u8[32768]{0}', space=vmem, size = 0x8000, scoped, tag = 'input window, operand 1, single buffered']
    #allocation6 [shape = 's32[1]{0}', space=sflag, size = 0x4, scoped, tag = 'scoped memory for tpu_custom_call.1']
    #allocation7 [shape = 'u8[8192]{0}', space=vmem, size = 0x2000, scoped, tag = 'output window, operand 0, single buffered']
    %10 = vsyncpa [#allocation3], 0
    %11 = vsyncpa [#allocation6], 0
    %12 = vsyncpa [#allocation4], 0
    // Predicated region
    $region2: #{tpu_custom_call.1} parent=1 // pred_check
      _
    $region3: #{tpu_custom_call.1} parent=1 // pred_check_branch
      %14 = sbr.rel (0) target = $region5
    $region4: #{tpu_custom_call.1} parent=1 // pred_region
      %16 = vsyncadd [#allocation3], 0
      %s17 = sshll.u32 %s0, 4
      %s18 = int_to_ptr.hbm [resolvable:$true] %s17
      %s19 = sshll.u32 [#allocation2], 4
      %s20 = int_to_ptr.vmem [resolvable:$true] %s19
      %25 = dma.hbm_to_vmem [thread:$0]  %s18, 256, %s20, [#allocation3], 128, 128, 8
    $region5: #{tpu_custom_call.1} parent=1 // pred_fallthru
      _
    // Predicated region
    $region6: #{tpu_custom_call.1} parent=1 // pred_check
      _
    $region7: #{tpu_custom_call.1} parent=1 // pred_check_branch
      %27 = sbr.rel (0) target = $region9
    $region8: #{tpu_custom_call.1} parent=1 // pred_region
      %29 = vsyncadd [#allocation6], 0
      %s30 = sshll.u32 %s1, 4
      %s31 = int_to_ptr.hbm [resolvable:$true] %s30
      %s32 = sshll.u32 [#allocation5], 4
      %s33 = int_to_ptr.vmem [resolvable:$true] %s32
      %38 = dma.hbm_to_vmem [thread:$0]  %s31, 1024, %s33, [#allocation6], 64, 64, 4
    $region9: #{tpu_custom_call.1} parent=1 // pred_fallthru
      _
    // Predicated region
    $region10: #{tpu_custom_call.1} parent=1 // pred_check
      _
    $region11: #{tpu_custom_call.1} parent=1 // pred_check_branch
      %40 = sbr.rel (0) target = $region13
    $region12: #{tpu_custom_call.1} parent=1 // pred_region
      _
    $region13: #{tpu_custom_call.1} parent=1 // pred_fallthru
      _
    // Predicated region
    $region14: #{tpu_custom_call.1} parent=1 // pred_check
      _
    $region15: #{tpu_custom_call.1} parent=1 // pred_check_branch
      %42 = sbr.rel (0) target = $region17
    $region16: #{tpu_custom_call.1} parent=1 // pred_region
      _
    $region17: #{tpu_custom_call.1} parent=1 // pred_fallthru
      _
    // Predicated region
    $region18: #{tpu_custom_call.1} parent=1 // pred_check
      _
    $region19: #{tpu_custom_call.1} parent=1 // pred_check_branch
      %44 = sbr.rel (0) target = $region21
    $region20: #{tpu_custom_call.1} parent=1 // pred_region
      _
    $region21: #{tpu_custom_call.1} parent=1 // pred_fallthru
      _
    // Predicated region
    $region22: #{tpu_custom_call.1} parent=1 // pred_check
      _
    $region23: #{tpu_custom_call.1} parent=1 // pred_check_branch
      %46 = sbr.rel (0) target = $region25
    $region24: #{tpu_custom_call.1} parent=1 // pred_region
      %48 = dma.done [#allocation3], 256
    $region25: #{tpu_custom_call.1} parent=1 // pred_fallthru
      _
    // Predicated region
    $region26: #{tpu_custom_call.1} parent=1 // pred_check
      _
    $region27: #{tpu_custom_call.1} parent=1 // pred_check_branch
      %50 = sbr.rel (0) target = $region29
    $region28: #{tpu_custom_call.1} parent=1 // pred_region
      %52 = dma.done [#allocation6], 1024
    $region29: #{tpu_custom_call.1} parent=1 // pred_fallthru
      _
    %v53 = vld [vmem:[#allocation2] sm:$0xff]
    %v54 = vld [vmem:[#allocation2 + $0x8] sm:$0xff]
    %v55 = vpack.c.bf16 %v54, %v53
    %v56 = vld [vmem:[#allocation5] sm:$0xf]
    %v57 = vld [vmem:[#allocation5 + $0x4] sm:$0xf]
    %v58 = vld [vmem:[#allocation5 + $0x8] sm:$0xf]
    %v59 = vld [vmem:[#allocation5 + $0xc] sm:$0xf]
    %v60 = vld [vmem:[#allocation5 + $0x10] sm:$0xf]
    %v61 = vld [vmem:[#allocation5 + $0x14] sm:$0xf]
    %v62 = vld [vmem:[#allocation5 + $0x18] sm:$0xf]
    %v63 = vld [vmem:[#allocation5 + $0x1c] sm:$0xf]
    %v64 = vld [vmem:[#allocation5 + $0x20] sm:$0xf]
    %v65 = vld [vmem:[#allocation5 + $0x24] sm:$0xf]
    %v66 = vld [vmem:[#allocation5 + $0x28] sm:$0xf]
    %v67 = vld [vmem:[#allocation5 + $0x2c] sm:$0xf]
    %v68 = vld [vmem:[#allocation5 + $0x30] sm:$0xf]
    %v69 = vld [vmem:[#allocation5 + $0x34] sm:$0xf]
    %v70 = vld [vmem:[#allocation5 + $0x38] sm:$0xf]
    %v71 = vld [vmem:[#allocation5 + $0x3c] sm:$0xf]
    %v72 = vld [vmem:[%s2] sm:$0x1]
    %v74 = vperm.slane %v72, 0
    %v92 = vunpack.c.l.b16 %v56
    %v93 = vunpack.c.l.b16 %v57
    %v94 = vunpack.c.l.b16 %v58
    %v95 = vunpack.c.l.b16 %v59
    %v96 = vunpack.c.l.b16 %v60
    %v97 = vunpack.c.l.b16 %v61
    %v98 = vunpack.c.l.b16 %v62
    %v99 = vunpack.c.l.b16 %v63
    %v100 = vunpack.c.l.b16 %v64
    %v101 = vunpack.c.l.b16 %v65
    %v102 = vunpack.c.l.b16 %v66
    %v103 = vunpack.c.l.b16 %v67
    %v104 = vunpack.c.l.b16 %v68
    %v105 = vunpack.c.l.b16 %v69
    %v106 = vunpack.c.l.b16 %v70
    %v107 = vunpack.c.l.b16 %v71
    %v108 = vpack.c.b16 %v93, %v92
    %v109 = vpack.c.b16 %v95, %v94
    %v110 = vpack.c.b16 %v97, %v96
    %v111 = vpack.c.b16 %v99, %v98
    %v112 = vpack.c.b16 %v101, %v100
    %v113 = vpack.c.b16 %v103, %v102
    %v114 = vpack.c.b16 %v105, %v104
    %v115 = vpack.c.b16 %v107, %v106
    %124 = vmatpush.bf16.xpose.msra.mxu0 %v115
    %125 = vmatpush.bf16.xpose.msra.mxu0 %v114
    %126 = vmatpush.bf16.xpose.msra.mxu0 %v113
    %127 = vmatpush.bf16.xpose.msra.mxu0 %v112
    %128 = vmatpush.bf16.xpose.msra.mxu0 %v111
    %129 = vmatpush.bf16.xpose.msra.mxu0 %v110
    %130 = vmatpush.bf16.xpose.msra.mxu0 %v109
    %131 = vmatpush.bf16.xpose.msra.mxu0 %v108
    %132 = vmatmul.bf16.gmra.mxu0 %v55
    %v133 = vpop.f32.mrf.mxu0
    %v134 = vadd.f32 %v74, %v133
    %v135 = vpop.f32.mrf.mxu0
    %v136 = vadd.f32 %v74, %v135
    %137 = vdwg.mxu0
    %v138 = vadd.f32 %v53, %v134
    %v139 = vadd.f32 %v54, %v136
    %140 = vadd.xlane.f32.xlu0 %v138
    %v141 = vpop.xlane.xlu0 %140
    %142 = vadd.xlane.f32.xlu0 %v139
    %v143 = vpop.xlane.xlu0 %142
    %v144 = vmul.f32 %v138, %v138
    %v145 = vmul.f32 %v139, %v139
    %146 = vadd.xlane.f32.xlu0 %v144
    %v147 = vpop.xlane.xlu0 %146
    %148 = vadd.xlane.f32.xlu0 %v145
    %v149 = vpop.xlane.xlu0 %148
    %v150 = vmul.f32 %v141, 0.03125
    %v151 = vmul.f32 %v143, 0.03125
    %v152 = vmul.f32 %v147, 0.03125
    %v153 = vmul.f32 %v149, 0.03125
    %v154 = vmul.f32 %v150, %v150
    %v155 = vmul.f32 %v151, %v151
    %v156 = vsub.f32 %v152, %v154
    %v157 = vsub.f32 %v153, %v155
    %v158 = vmax.f32 %v156, 0.0
    %v159 = vmax.f32 %v157, 0.0
    %v160 = vsub.f32 %v138, %v150
    %v161 = vsub.f32 %v139, %v151
    %v162 = vadd.f32 %v158, 1e-05
    %v163 = vadd.f32 %v159, 1e-05
    %v164 = vrsqrt.pop %v162
    %v165 = vmul.f32 %v164, %v162
    %v166 = vmul.f32 %v165, %v164
    %v167 = vmul.f32 0.5, %v166
    %v168 = vsub.f32 1.5, %v167
    %v169 = vmul.f32 %v164, %v168
    %vm170 = vweird.f32 %v162
    %vm171 = vweird.f32 %v164
    %vm172 = vmor %vm170, %vm171
    %v173 = vsel %vm172, %v164, %v169
    %v174 = vrsqrt.pop %v163
    %v175 = vmul.f32 %v174, %v163
    %v176 = vmul.f32 %v175, %v174
    %v177 = vmul.f32 0.5, %v176
    %v178 = vsub.f32 1.5, %v177
    %v179 = vmul.f32 %v174, %v178
    %vm180 = vweird.f32 %v163
    %vm181 = vweird.f32 %v174
    %vm182 = vmor %vm180, %vm181
    %v183 = vsel %vm182, %v174, %v179
    %v184 = vmul.f32 %v160, %v173
    %v185 = vmul.f32 %v161, %v183
    %v186 = vld [vmem:[%s3] sm:$0x1]
    %v188 = vperm.slane %v186, 0
    %v190 = vmul.f32 %v184, %v188
    %v191 = vmul.f32 %v185, %v188
    %v192 = vld [vmem:[%s4] sm:$0x1]
    %v194 = vperm.slane %v192, 0
    %v196 = vadd.f32 %v190, %v194
    %v197 = vadd.f32 %v191, %v194
    %198 = vst [vmem:[#allocation7] sm:$0xff] %v196
    %199 = vst [vmem:[#allocation7 + $0x8] sm:$0xff] %v197
    // Predicated region
    $region30: #{tpu_custom_call.1} parent=1 // pred_check
      _
    $region31: #{tpu_custom_call.1} parent=1 // pred_check_branch
      %201 = sbr.rel (0) target = $region33
    $region32: #{tpu_custom_call.1} parent=1 // pred_region
      %203 = vsyncadd [#allocation4], 0
      %s204 = sshll.u32 [#allocation7], 4
      %s205 = int_to_ptr.vmem [resolvable:$true] %s204
      %s206 = sshll.u32 %s5, 4
      %s207 = int_to_ptr.hbm [resolvable:$true] %s206
      %212 = dma.vmem_to_hbm [thread:$0]  %s205, 256, %s207, [#allocation4], 128, 128, 8
    $region33: #{tpu_custom_call.1} parent=1 // pred_fallthru
      _
    // Predicated region
    $region34: #{tpu_custom_call.1} parent=1 // pred_check
      _
    $region35: #{tpu_custom_call.1} parent=1 // pred_check_branch
      %214 = sbr.rel (0) target = $region37
    $region36: #{tpu_custom_call.1} parent=1 // pred_region
      %216 = dma.done [#allocation4], 256
    $region37: #{tpu_custom_call.1} parent=1 // pred_fallthru
      _
    %217 = vsyncpa [#allocation3], 1
    %218 = vsyncpa [#allocation6], 1
    %219 = vsyncpa [#allocation4], 1

</llo_original>
